<compile_context>
chip_gen: v5e
topology: v5e:2x2
jax: 0.10.0
libtpu: 0.0.40
codegen_flags: <defaults>
</compile_context>

<pallas_src>
import functools

import jax
import jax.numpy as jnp
from jax.experimental import pallas as pl
from jax.experimental.pallas import tpu as pltpu


def mlp_block_kernel(x_ref, w_ref, b_ref, o_ref, *, num_layers, chunk_rows):
    # x_ref/o_ref: (TM, W) activation tile; w_ref: (L, W, W); b_ref: (L, W).
    b_all = b_ref[...]                        # hoist: load all biases once
    n_chunks = x_ref.shape[0] // chunk_rows   # static

    @pl.loop(0, n_chunks)
    def _(c):
        r0 = pl.multiple_of(c * chunk_rows, chunk_rows)
        h = x_ref[pl.ds(r0, chunk_rows), :]
        # Chunk-major: run every layer on this register-resident chunk.
        for layer in range(num_layers):
            w = w_ref[layer]                  # (W, W) pre-transposed/block-diag
            y = jnp.dot(h.astype(w_ref.dtype), w,
                        preferred_element_type=jnp.float32)
            h = jnp.maximum(y + b_all[layer:layer + 1, :], 0.0)   # bias+ReLU f32
        o_ref[pl.ds(r0, chunk_rows), :] = h.astype(o_ref.dtype)


def mlp_block(x, weights, biases, *, param_dtype=None, tile_bytes=2 << 20):
    """Forward pass of MLPBlock.

    x:       (B, D)    float32
    weights: (L, D, D) PyTorch nn.Linear layout (out_dim, in_dim)
    biases:  (L, D)
    param_dtype: optional weight storage dtype (e.g. jnp.bfloat16 for v6e/v7x).
    """
    num_layers, out_dim, in_dim = weights.shape
    batch, dim = x.shape
    assert dim == in_dim == out_dim, "stacked Linear layers require square weights"
    assert biases.shape == (num_layers, out_dim)

    # ---- lane packing: place `pack` batch rows side by side in the 128 lanes ----
    pack = 128 // dim if (dim < 128 and 128 % dim == 0) else 1
    width = pack * dim

    w_t = jnp.transpose(weights, (0, 2, 1))            # (L, D, D) = per-layer W^T
    if pack > 1:
        eye = jnp.eye(pack, dtype=w_t.dtype)
        # Block-diagonal (L, pack*D, pack*D): W^T repeated `pack` times on the diag.
        w_k = jnp.einsum("pq,lij->lpiqj", eye, w_t).reshape(num_layers, width, width)
        b_k = jnp.tile(biases, (1, pack))               # (L, pack*D)
    else:
        w_k, b_k = w_t, biases
    if param_dtype is not None:
        w_k = w_k.astype(param_dtype)                   # bf16 weights for v6e/v7x MXU

    # ---- tile sizing (in packed rows) ----
    rows = -(-batch // pack)                            # packed rows (pre-tiling pad)
    CHUNK = 128                                         # packed rows per in-kernel chunk
    bytes_per_row = width * jnp.dtype(x.dtype).itemsize
    if rows <= 8:
        tm = rows
        chunk_rows = max(rows, 1)
    else:
        # ~tile_bytes of activation per grid step, but at least 2 grid steps so
        # v7x's two TensorCores both get work (neutral on v5e/v6e's single TC).
        budget_tm = max(CHUNK, (tile_bytes // bytes_per_row) // CHUNK * CHUNK)
        half = -(-rows // 2)
        if rows <= 2 * CHUNK:
            half_tiles = -(-half // 8) * 8              # sublane multiple
        else:
            half_tiles = -(-half // CHUNK) * CHUNK      # chunk multiple
        tm = min(budget_tm, half_tiles)
        chunk_rows = min(CHUNK, tm)
        tm = max(chunk_rows, tm // chunk_rows * chunk_rows)

    padded_rows = -(-rows // tm) * tm                   # no partial grid block
    pad_batch = padded_rows * pack - batch
    x_p = jnp.pad(x, ((0, pad_batch), (0, 0))) if pad_batch else x
    x_packed = x_p.reshape(padded_rows, width)

    grid = (padded_rows // tm,)
    # VMEM budget: 2 (double-buffer) x 2 (in + out) x tm*width*4B + weight stack
    # stays well under v7x's 32 MiB scoped default, so no vmem_limit override.
    kernel = functools.partial(
        mlp_block_kernel, num_layers=num_layers, chunk_rows=chunk_rows)
    out_packed = pl.pallas_call(
        kernel,
        out_shape=jax.ShapeDtypeStruct((padded_rows, width), x.dtype),
        grid=grid,
        in_specs=[
            pl.BlockSpec((tm, width), lambda i: (i, 0)),   # activations: batch-tiled
            pl.BlockSpec(w_k.shape, lambda i: (0, 0, 0)),  # weights: VMEM-resident
            pl.BlockSpec(b_k.shape, lambda i: (0, 0)),     # biases: VMEM-resident
        ],
        out_specs=pl.BlockSpec((tm, width), lambda i: (i, 0)),
        compiler_params=pltpu.CompilerParams(
            dimension_semantics=("parallel",),
        ),
    )(x_packed, w_k, b_k)

    return out_packed.reshape(padded_rows * pack, dim)[:batch]


def mlp_block_ref(x, weights, biases):
    h = x
    for layer in range(weights.shape[0]):
        h = jnp.maximum(h @ weights[layer].T + biases[layer], 0.0)
    return h


if __name__ == "__main__":
    dim = 32            # input_dim == output_dim (required to stack the Linears)
    num_layers = 10

    key = jax.random.PRNGKey(0)
    kx, kw, kb = jax.random.split(key, 3)
    bound = 1.0 / jnp.sqrt(dim)
    weights = jax.random.uniform(
        kw, (num_layers, dim, dim), minval=-bound, maxval=bound, dtype=jnp.float32)
    biases = jax.random.uniform(
        kb, (num_layers, dim), minval=-bound, maxval=bound, dtype=jnp.float32)

    # Small case: single grid step, single chunk.
    x_small = jax.random.normal(kx, (8, dim), dtype=jnp.float32)
    out_small = jax.block_until_ready(mlp_block(x_small, weights, biases))
    assert out_small.shape == (8, dim)
    assert jnp.allclose(out_small, mlp_block_ref(x_small, weights, biases),
                        atol=1e-5, rtol=1e-5)

    # Moderate case: exercises batch padding, >=2 parallel grid steps (v7x TC
    # sharding) and the in-kernel multi-chunk pl.loop path.
    x_big = jax.random.normal(kx, (2050, dim), dtype=jnp.float32)
    out_big = jax.block_until_ready(mlp_block(x_big, weights, biases))
    assert out_big.shape == (2050, dim)
    assert jnp.allclose(out_big, mlp_block_ref(x_big, weights, biases),
                        atol=1e-5, rtol=1e-5)

    print("KERNEL_OK")
</pallas_src>

<mosaic_0001>
module attributes {stable_mosaic.version = 11 : i64} {
  func.func @mlp_block_kernel(%arg0: i32, %arg1: memref<2x128xf32, #tpu.memory_space<vmem>>, %arg2: memref<10x128x128xf32, #tpu.memory_space<vmem>>, %arg3: memref<10x128xf32, #tpu.memory_space<vmem>>, %arg4: memref<2x128xf32, #tpu.memory_space<vmem>>) attributes {dimension_semantics = [#tpu.dimension_semantics<parallel>], iteration_bounds = array<i64: 1>, scalar_prefetch = 0 : i64, scratch_operands = 0 : i64, tpu.core_type = #tpu.core_type<tc>, window_params = [{transform_indices = @transform_0, window_bounds = array<i64: 2, 128>}, {pipeline_mode = #tpu.pipeline_mode<synchronous>, transform_indices = @transform_1, window_bounds = array<i64: 10, 128, 128>}, {pipeline_mode = #tpu.pipeline_mode<synchronous>, transform_indices = @transform_2, window_bounds = array<i64: 10, 128>}, {transform_indices = @transform_3, window_bounds = array<i64: 2, 128>}]} {
    %c0 = arith.constant 0 : index
    %c0_0 = arith.constant 0 : index
    %0 = vector.load %arg3[%c0, %c0_0] : memref<10x128xf32, #tpu.memory_space<vmem>>, vector<10x128xf32>
    %c0_i32 = arith.constant 0 : i32
    %c1_i32 = arith.constant 1 : i32
    %1 = arith.muli %c0_i32, %c1_i32 : i32
    %c0_i32_1 = arith.constant 0 : i32
    %2 = arith.addi %c0_i32_1, %1 : i32
    %c2_i32 = arith.constant 2 : i32
    %3 = arith.muli %2, %c2_i32 : i32
    %4 = tpu.assume_multiple %3, 2 : i32
    %5 = arith.index_cast %4 : i32 to index
    %c0_2 = arith.constant 0 : index
    %6 = vector.load %arg1[%5, %c0_2] : memref<2x128xf32, #tpu.memory_space<vmem>>, vector<2x128xf32>
    %c0_3 = arith.constant 0 : index
    %c0_4 = arith.constant 0 : index
    %c0_5 = arith.constant 0 : index
    %7 = vector.load %arg2[%c0_3, %c0_4, %c0_5] : memref<10x128x128xf32, #tpu.memory_space<vmem>>, vector<1x128x128xf32>
    %8 = vector.shape_cast %7 : vector<1x128x128xf32> to vector<128x128xf32>
    %cst = arith.constant dense<0.000000e+00> : vector<2x128xf32>
    %9 = tpu.matmul %6, %8, %cst {dimension_numbers = #tpu.dot_dimension_numbers<[1], [0], [0], [1], [0, 0, 1, 1], [], []>} : vector<2x128xf32>, vector<128x128xf32>, vector<2x128xf32> -> vector<2x128xf32>
    %10 = vector.extract_strided_slice %0 {offsets = [0, 0], sizes = [1, 128], strides = [1, 1]} : vector<10x128xf32> to vector<1x128xf32>
    %11 = vector.broadcast %10 : vector<1x128xf32> to vector<2x128xf32>
    %12 = arith.addf %9, %11 : vector<2x128xf32>
    %cst_6 = arith.constant 0.000000e+00 : f32
    %13 = vector.broadcast %cst_6 : f32 to vector<2x128xf32>
    %14 = arith.maximumf %12, %13 : vector<2x128xf32>
    %c1 = arith.constant 1 : index
    %c0_7 = arith.constant 0 : index
    %c0_8 = arith.constant 0 : index
    %15 = vector.load %arg2[%c1, %c0_7, %c0_8] : memref<10x128x128xf32, #tpu.memory_space<vmem>>, vector<1x128x128xf32>
    %16 = vector.shape_cast %15 : vector<1x128x128xf32> to vector<128x128xf32>
    %cst_9 = arith.constant dense<0.000000e+00> : vector<2x128xf32>
    %17 = tpu.matmul %14, %16, %cst_9 {dimension_numbers = #tpu.dot_dimension_numbers<[1], [0], [0], [1], [0, 0, 1, 1], [], []>} : vector<2x128xf32>, vector<128x128xf32>, vector<2x128xf32> -> vector<2x128xf32>
    %18 = vector.extract_strided_slice %0 {offsets = [1, 0], sizes = [1, 128], strides = [1, 1]} : vector<10x128xf32> to vector<1x128xf32>
    %19 = vector.broadcast %18 : vector<1x128xf32> to vector<2x128xf32>
    %20 = arith.addf %17, %19 : vector<2x128xf32>
    %cst_10 = arith.constant 0.000000e+00 : f32
    %21 = vector.broadcast %cst_10 : f32 to vector<2x128xf32>
    %22 = arith.maximumf %20, %21 : vector<2x128xf32>
    %c2 = arith.constant 2 : index
    %c0_11 = arith.constant 0 : index
    %c0_12 = arith.constant 0 : index
    %23 = vector.load %arg2[%c2, %c0_11, %c0_12] : memref<10x128x128xf32, #tpu.memory_space<vmem>>, vector<1x128x128xf32>
    %24 = vector.shape_cast %23 : vector<1x128x128xf32> to vector<128x128xf32>
    %cst_13 = arith.constant dense<0.000000e+00> : vector<2x128xf32>
    %25 = tpu.matmul %22, %24, %cst_13 {dimension_numbers = #tpu.dot_dimension_numbers<[1], [0], [0], [1], [0, 0, 1, 1], [], []>} : vector<2x128xf32>, vector<128x128xf32>, vector<2x128xf32> -> vector<2x128xf32>
    %26 = vector.extract_strided_slice %0 {offsets = [2, 0], sizes = [1, 128], strides = [1, 1]} : vector<10x128xf32> to vector<1x128xf32>
    %27 = vector.broadcast %26 : vector<1x128xf32> to vector<2x128xf32>
    %28 = arith.addf %25, %27 : vector<2x128xf32>
    %cst_14 = arith.constant 0.000000e+00 : f32
    %29 = vector.broadcast %cst_14 : f32 to vector<2x128xf32>
    %30 = arith.maximumf %28, %29 : vector<2x128xf32>
    %c3 = arith.constant 3 : index
    %c0_15 = arith.constant 0 : index
    %c0_16 = arith.constant 0 : index
    %31 = vector.load %arg2[%c3, %c0_15, %c0_16] : memref<10x128x128xf32, #tpu.memory_space<vmem>>, vector<1x128x128xf32>
    %32 = vector.shape_cast %31 : vector<1x128x128xf32> to vector<128x128xf32>
    %cst_17 = arith.constant dense<0.000000e+00> : vector<2x128xf32>
    %33 = tpu.matmul %30, %32, %cst_17 {dimension_numbers = #tpu.dot_dimension_numbers<[1], [0], [0], [1], [0, 0, 1, 1], [], []>} : vector<2x128xf32>, vector<128x128xf32>, vector<2x128xf32> -> vector<2x128xf32>
    %34 = vector.extract_strided_slice %0 {offsets = [3, 0], sizes = [1, 128], strides = [1, 1]} : vector<10x128xf32> to vector<1x128xf32>
    %35 = vector.broadcast %34 : vector<1x128xf32> to vector<2x128xf32>
    %36 = arith.addf %33, %35 : vector<2x128xf32>
    %cst_18 = arith.constant 0.000000e+00 : f32
    %37 = vector.broadcast %cst_18 : f32 to vector<2x128xf32>
    %38 = arith.maximumf %36, %37 : vector<2x128xf32>
    %c4 = arith.constant 4 : index
    %c0_19 = arith.constant 0 : index
    %c0_20 = arith.constant 0 : index
    %39 = vector.load %arg2[%c4, %c0_19, %c0_20] : memref<10x128x128xf32, #tpu.memory_space<vmem>>, vector<1x128x128xf32>
    %40 = vector.shape_cast %39 : vector<1x128x128xf32> to vector<128x128xf32>
    %cst_21 = arith.constant dense<0.000000e+00> : vector<2x128xf32>
    %41 = tpu.matmul %38, %40, %cst_21 {dimension_numbers = #tpu.dot_dimension_numbers<[1], [0], [0], [1], [0, 0, 1, 1], [], []>} : vector<2x128xf32>, vector<128x128xf32>, vector<2x128xf32> -> vector<2x128xf32>
    %42 = vector.extract_strided_slice %0 {offsets = [4, 0], sizes = [1, 128], strides = [1, 1]} : vector<10x128xf32> to vector<1x128xf32>
    %43 = vector.broadcast %42 : vector<1x128xf32> to vector<2x128xf32>
    %44 = arith.addf %41, %43 : vector<2x128xf32>
    %cst_22 = arith.constant 0.000000e+00 : f32
    %45 = vector.broadcast %cst_22 : f32 to vector<2x128xf32>
    %46 = arith.maximumf %44, %45 : vector<2x128xf32>
    %c5 = arith.constant 5 : index
    %c0_23 = arith.constant 0 : index
    %c0_24 = arith.constant 0 : index
    %47 = vector.load %arg2[%c5, %c0_23, %c0_24] : memref<10x128x128xf32, #tpu.memory_space<vmem>>, vector<1x128x128xf32>
    %48 = vector.shape_cast %47 : vector<1x128x128xf32> to vector<128x128xf32>
    %cst_25 = arith.constant dense<0.000000e+00> : vector<2x128xf32>
    %49 = tpu.matmul %46, %48, %cst_25 {dimension_numbers = #tpu.dot_dimension_numbers<[1], [0], [0], [1], [0, 0, 1, 1], [], []>} : vector<2x128xf32>, vector<128x128xf32>, vector<2x128xf32> -> vector<2x128xf32>
    %50 = vector.extract_strided_slice %0 {offsets = [5, 0], sizes = [1, 128], strides = [1, 1]} : vector<10x128xf32> to vector<1x128xf32>
    %51 = vector.broadcast %50 : vector<1x128xf32> to vector<2x128xf32>
    %52 = arith.addf %49, %51 : vector<2x128xf32>
    %cst_26 = arith.constant 0.000000e+00 : f32
    %53 = vector.broadcast %cst_26 : f32 to vector<2x128xf32>
    %54 = arith.maximumf %52, %53 : vector<2x128xf32>
    %c6 = arith.constant 6 : index
    %c0_27 = arith.constant 0 : index
    %c0_28 = arith.constant 0 : index
    %55 = vector.load %arg2[%c6, %c0_27, %c0_28] : memref<10x128x128xf32, #tpu.memory_space<vmem>>, vector<1x128x128xf32>
    %56 = vector.shape_cast %55 : vector<1x128x128xf32> to vector<128x128xf32>
    %cst_29 = arith.constant dense<0.000000e+00> : vector<2x128xf32>
    %57 = tpu.matmul %54, %56, %cst_29 {dimension_numbers = #tpu.dot_dimension_numbers<[1], [0], [0], [1], [0, 0, 1, 1], [], []>} : vector<2x128xf32>, vector<128x128xf32>, vector<2x128xf32> -> vector<2x128xf32>
    %58 = vector.extract_strided_slice %0 {offsets = [6, 0], sizes = [1, 128], strides = [1, 1]} : vector<10x128xf32> to vector<1x128xf32>
    %59 = vector.broadcast %58 : vector<1x128xf32> to vector<2x128xf32>
    %60 = arith.addf %57, %59 : vector<2x128xf32>
    %cst_30 = arith.constant 0.000000e+00 : f32
    %61 = vector.broadcast %cst_30 : f32 to vector<2x128xf32>
    %62 = arith.maximumf %60, %61 : vector<2x128xf32>
    %c7 = arith.constant 7 : index
    %c0_31 = arith.constant 0 : index
    %c0_32 = arith.constant 0 : index
    %63 = vector.load %arg2[%c7, %c0_31, %c0_32] : memref<10x128x128xf32, #tpu.memory_space<vmem>>, vector<1x128x128xf32>
    %64 = vector.shape_cast %63 : vector<1x128x128xf32> to vector<128x128xf32>
    %cst_33 = arith.constant dense<0.000000e+00> : vector<2x128xf32>
    %65 = tpu.matmul %62, %64, %cst_33 {dimension_numbers = #tpu.dot_dimension_numbers<[1], [0], [0], [1], [0, 0, 1, 1], [], []>} : vector<2x128xf32>, vector<128x128xf32>, vector<2x128xf32> -> vector<2x128xf32>
    %66 = vector.extract_strided_slice %0 {offsets = [7, 0], sizes = [1, 128], strides = [1, 1]} : vector<10x128xf32> to vector<1x128xf32>
    %67 = vector.broadcast %66 : vector<1x128xf32> to vector<2x128xf32>
    %68 = arith.addf %65, %67 : vector<2x128xf32>
    %cst_34 = arith.constant 0.000000e+00 : f32
    %69 = vector.broadcast %cst_34 : f32 to vector<2x128xf32>
    %70 = arith.maximumf %68, %69 : vector<2x128xf32>
    %c8 = arith.constant 8 : index
    %c0_35 = arith.constant 0 : index
    %c0_36 = arith.constant 0 : index
    %71 = vector.load %arg2[%c8, %c0_35, %c0_36] : memref<10x128x128xf32, #tpu.memory_space<vmem>>, vector<1x128x128xf32>
    %72 = vector.shape_cast %71 : vector<1x128x128xf32> to vector<128x128xf32>
    %cst_37 = arith.constant dense<0.000000e+00> : vector<2x128xf32>
    %73 = tpu.matmul %70, %72, %cst_37 {dimension_numbers = #tpu.dot_dimension_numbers<[1], [0], [0], [1], [0, 0, 1, 1], [], []>} : vector<2x128xf32>, vector<128x128xf32>, vector<2x128xf32> -> vector<2x128xf32>
    %74 = vector.extract_strided_slice %0 {offsets = [8, 0], sizes = [1, 128], strides = [1, 1]} : vector<10x128xf32> to vector<1x128xf32>
    %75 = vector.broadcast %74 : vector<1x128xf32> to vector<2x128xf32>
    %76 = arith.addf %73, %75 : vector<2x128xf32>
    %cst_38 = arith.constant 0.000000e+00 : f32
    %77 = vector.broadcast %cst_38 : f32 to vector<2x128xf32>
    %78 = arith.maximumf %76, %77 : vector<2x128xf32>
    %c9 = arith.constant 9 : index
    %c0_39 = arith.constant 0 : index
    %c0_40 = arith.constant 0 : index
    %79 = vector.load %arg2[%c9, %c0_39, %c0_40] : memref<10x128x128xf32, #tpu.memory_space<vmem>>, vector<1x128x128xf32>
    %80 = vector.shape_cast %79 : vector<1x128x128xf32> to vector<128x128xf32>
    %cst_41 = arith.constant dense<0.000000e+00> : vector<2x128xf32>
    %81 = tpu.matmul %78, %80, %cst_41 {dimension_numbers = #tpu.dot_dimension_numbers<[1], [0], [0], [1], [0, 0, 1, 1], [], []>} : vector<2x128xf32>, vector<128x128xf32>, vector<2x128xf32> -> vector<2x128xf32>
    %82 = vector.extract_strided_slice %0 {offsets = [9, 0], sizes = [1, 128], strides = [1, 1]} : vector<10x128xf32> to vector<1x128xf32>
    %83 = vector.broadcast %82 : vector<1x128xf32> to vector<2x128xf32>
    %84 = arith.addf %81, %83 : vector<2x128xf32>
    %cst_42 = arith.constant 0.000000e+00 : f32
    %85 = vector.broadcast %cst_42 : f32 to vector<2x128xf32>
    %86 = arith.maximumf %84, %85 : vector<2x128xf32>
    %87 = arith.index_cast %4 : i32 to index
    %c0_43 = arith.constant 0 : index
    %88 = vector.load %arg4[%87, %c0_43] : memref<2x128xf32, #tpu.memory_space<vmem>>, vector<2x128xf32>
    tpu.vector_store %arg4[%87, %c0_43], %86 {strides = array<i32>} : memref<2x128xf32, #tpu.memory_space<vmem>>, vector<2x128xf32>,
    %c1_i32_44 = arith.constant 1 : i32
    return
  }
  func.func @transform_0(%arg0: i32) -> (i32, i32) {
    %c0_i32 = arith.constant 0 : i32
    %c0_i32_0 = arith.constant 0 : i32
    return %arg0, %c0_i32 : i32, i32
  }
  func.func @transform_1(%arg0: i32) -> (i32, i32, i32) {
    %c0_i32 = arith.constant 0 : i32
    %c0_i32_0 = arith.constant 0 : i32
    %c0_i32_1 = arith.constant 0 : i32
    %c0_i32_2 = arith.constant 0 : i32
    return %c0_i32, %c0_i32_0, %c0_i32_1 : i32, i32, i32
  }
  func.func @transform_2(%arg0: i32) -> (i32, i32) {
    %c0_i32 = arith.constant 0 : i32
    %c0_i32_0 = arith.constant 0 : i32
    %c0_i32_1 = arith.constant 0 : i32
    return %c0_i32, %c0_i32_0 : i32, i32
  }
  func.func @transform_3(%arg0: i32) -> (i32, i32) {
    %c0_i32 = arith.constant 0 : i32
    %c0_i32_0 = arith.constant 0 : i32
    return %arg0, %c0_i32 : i32, i32
  }
}

</mosaic_0001>

<llo_original>
// kernel: tpu_custom_call.1
$region0: #{tpu_custom_call.1}
  #allocation0 [shape = 'u32[]', space=smem, size = 0x4, offset = 0x4, fixed_abs, tag = 'smem constant byte address 0x4 - core index']
  #allocation1 [shape = 'u32[72,128]{1,0:T(1,128)}', space=vmem, size = 0x9000, scoped, tag = 'internal scratch']
  %s0 = inlined_call_operand.hbm [shape: f32[2,128], index: 0, kind: input, shape index: {}]
  %s1 = inlined_call_operand.hbm [shape: f32[10,128,128], index: 1, kind: input, shape index: {}]
  %s2 = inlined_call_operand.hbm [shape: f32[10,128], index: 2, kind: input, shape index: {}]
  %s3 = inlined_call_operand.hbm [shape: f32[2,128], index: 3, kind: output, shape index: {}]
  %s4 = sld [smem:[#allocation0]]
  $region34: #{tpu_custom_call.1} parent=0
    _
  %s6 = ssub.s32 1, %s4
  %s7 = scalar_select 0, %s6, %s4
  $region1: #{tpu_custom_call.1} parent=0
    #allocation2 [shape = 'u8[1024]{0}', space=vmem, size = 0x400, scoped, tag = 'input window, operand 0, single buffered']
    #allocation3 [shape = 's32[1]{0}', space=sflag, size = 0x4, scoped, tag = 'scoped memory for tpu_custom_call.1']
    #allocation4 [shape = 's32[1]{0}', space=sflag, size = 0x4, scoped, tag = 'scoped memory for tpu_custom_call.1']
    #allocation5 [shape = 'u8[655360]{0}', space=vmem, size = 0xa0000, scoped, tag = 'input window, operand 1, single buffered']
    #allocation6 [shape = 's32[1]{0}', space=sflag, size = 0x4, scoped, tag = 'scoped memory for tpu_custom_call.1']
    #allocation7 [shape = 'u8[8192]{0}', space=vmem, size = 0x2000, scoped, tag = 'input window, operand 2, single buffered']
    #allocation8 [shape = 'u8[1024]{0}', space=vmem, size = 0x400, scoped, tag = 'output window, operand 0, single buffered']
    %8 = vsyncpa [#allocation3], 0
    %9 = vsyncpa [#allocation6], 0
    %10 = vsyncpa [#allocation4], 0
    // Predicated region
    $region2: #{tpu_custom_call.1} parent=1 // pred_check
      _
    $region3: #{tpu_custom_call.1} parent=1 // pred_check_branch
      %12 = sbr.rel (0) target = $region5
    $region4: #{tpu_custom_call.1} parent=1 // pred_region
      %14 = vsyncadd [#allocation3], 0
      %s16 = sshll.u32 %s0, 4
      %s17 = int_to_ptr.hbm [resolvable:$true] %s16
      %s18 = sshll.u32 [#allocation2], 4
      %s19 = int_to_ptr.vmem [resolvable:$true] %s18
      %21 = dma.hbm_to_vmem [thread:$0]  %s17, 32, %s19, [#allocation3]
    $region5: #{tpu_custom_call.1} parent=1 // pred_fallthru
      _
    // Predicated region
    $region6: #{tpu_custom_call.1} parent=1 // pred_check
      _
    $region7: #{tpu_custom_call.1} parent=1 // pred_check_branch
      %23 = sbr.rel (0) target = $region9
    $region8: #{tpu_custom_call.1} parent=1 // pred_region
      %25 = vsyncadd [#allocation6], 0
      %s26 = sshll.u32 %s1, 4
      %s27 = int_to_ptr.hbm [resolvable:$true] %s26
      %s28 = sshll.u32 [#allocation5], 4
      %s29 = int_to_ptr.vmem [resolvable:$true] %s28
      %34 = dma.hbm_to_vmem [thread:$0]  %s27, 20480, %s29, [#allocation6], 128, 128, 8
    $region9: #{tpu_custom_call.1} parent=1 // pred_fallthru
      _
    // Predicated region
    $region10: #{tpu_custom_call.1} parent=1 // pred_check
      _
    $region11: #{tpu_custom_call.1} parent=1 // pred_check_branch
      %36 = sbr.rel (0) target = $region13
    $region12: #{tpu_custom_call.1} parent=1 // pred_region
      %38 = vsyncadd [#allocation6], 0
      %s39 = sshll.u32 %s2, 4
      %s40 = int_to_ptr.hbm [resolvable:$true] %s39
      %s41 = sshll.u32 [#allocation7], 4
      %s42 = int_to_ptr.vmem [resolvable:$true] %s41
      %47 = dma.hbm_to_vmem [thread:$0]  %s40, 256, %s42, [#allocation6], 128, 128, 8
    $region13: #{tpu_custom_call.1} parent=1 // pred_fallthru
      _
    // Predicated region
    $region14: #{tpu_custom_call.1} parent=1 // pred_check
      _
    $region15: #{tpu_custom_call.1} parent=1 // pred_check_branch
      %49 = sbr.rel (0) target = $region17
    $region16: #{tpu_custom_call.1} parent=1 // pred_region
      %51 = dma.done [#allocation3], 32
    $region17: #{tpu_custom_call.1} parent=1 // pred_fallthru
      _
    // Predicated region
    $region18: #{tpu_custom_call.1} parent=1 // pred_check
      _
    $region19: #{tpu_custom_call.1} parent=1 // pred_check_branch
      %53 = sbr.rel (0) target = $region21
    $region20: #{tpu_custom_call.1} parent=1 // pred_region
      %55 = dma.done [#allocation6], 20480
    $region21: #{tpu_custom_call.1} parent=1 // pred_fallthru
      _
    // Predicated region
    $region22: #{tpu_custom_call.1} parent=1 // pred_check
      _
    $region23: #{tpu_custom_call.1} parent=1 // pred_check_branch
      %57 = sbr.rel (0) target = $region25
    $region24: #{tpu_custom_call.1} parent=1 // pred_region
      %59 = dma.done [#allocation6], 256
    $region25: #{tpu_custom_call.1} parent=1 // pred_fallthru
      _
    %v60 = vld [vmem:[#allocation7] sm:$0xff]
    %v61 = vld [vmem:[#allocation7 + $0x8] sm:$0x3]
    %v62 = vld [vmem:[#allocation2] sm:$0x3]
    %v63 = vld [vmem:[#allocation5] sm:$0xff]
    %v64 = vld [vmem:[#allocation5 + $0x8] sm:$0xff]
    %v65 = vld [vmem:[#allocation5 + $0x10] sm:$0xff]
    %v66 = vld [vmem:[#allocation5 + $0x18] sm:$0xff]
    %v67 = vld [vmem:[#allocation5 + $0x20] sm:$0xff]
    %v68 = vld [vmem:[#allocation5 + $0x28] sm:$0xff]
    %v69 = vld [vmem:[#allocation5 + $0x30] sm:$0xff]
    %v70 = vld [vmem:[#allocation5 + $0x38] sm:$0xff]
    %v71 = vld [vmem:[#allocation5 + $0x40] sm:$0xff]
    %v72 = vld [vmem:[#allocation5 + $0x48] sm:$0xff]
    %v73 = vld [vmem:[#allocation5 + $0x50] sm:$0xff]
    %v74 = vld [vmem:[#allocation5 + $0x58] sm:$0xff]
    %v75 = vld [vmem:[#allocation5 + $0x60] sm:$0xff]
    %v76 = vld [vmem:[#allocation5 + $0x68] sm:$0xff]
    %v77 = vld [vmem:[#allocation5 + $0x70] sm:$0xff]
    %v78 = vld [vmem:[#allocation5 + $0x78] sm:$0xff]
    %v79 = vperm.slane %v60, 0
    %80 = vmatpush.msra.mxu0 %v78
    %81 = vmatpush.msra.mxu0 %v77
    %82 = vmatpush.msra.mxu0 %v76
    %83 = vmatpush.msra.mxu0 %v75
    %84 = vmatpush.msra.mxu0 %v74
    %85 = vmatpush.msra.mxu0 %v73
    %86 = vmatpush.msra.mxu0 %v72
    %87 = vmatpush.msra.mxu0 %v71
    %88 = vmatpush.msra.mxu0 %v70
    %89 = vmatpush.msra.mxu0 %v69
    %90 = vmatpush.msra.mxu0 %v68
    %91 = vmatpush.msra.mxu0 %v67
    %92 = vmatpush.msra.mxu0 %v66
    %93 = vmatpush.msra.mxu0 %v65
    %94 = vmatpush.msra.mxu0 %v64
    %95 = vmatpush.msra.mxu0 %v63
    %96 = vmatmul.f32.gmra.mxu0 %v62
    %v97 = vpop.f32.mrf.mxu0
    %v98 = vadd.f32 %v79, %v97
    %99 = vdwg.mxu0
    %v100 = vmax.f32 %v98, 0.0
    %s101 = scalar_lea.vmem [#allocation5], 128
    %v102 = vld [vmem:[%s101] sm:$0xff]
    %v103 = vld [vmem:[%s101 + $0x8] sm:$0xff]
    %v104 = vld [vmem:[%s101 + $0x10] sm:$0xff]
    %v105 = vld [vmem:[%s101 + $0x18] sm:$0xff]
    %v106 = vld [vmem:[%s101 + $0x20] sm:$0xff]
    %v107 = vld [vmem:[%s101 + $0x28] sm:$0xff]
    %v108 = vld [vmem:[%s101 + $0x30] sm:$0xff]
    %v109 = vld [vmem:[%s101 + $0x38] sm:$0xff]
    %v110 = vld [vmem:[%s101 + $0x40] sm:$0xff]
    %v111 = vld [vmem:[%s101 + $0x48] sm:$0xff]
    %v112 = vld [vmem:[%s101 + $0x50] sm:$0xff]
    %v113 = vld [vmem:[%s101 + $0x58] sm:$0xff]
    %v114 = vld [vmem:[%s101 + $0x60] sm:$0xff]
    %v115 = vld [vmem:[%s101 + $0x68] sm:$0xff]
    %v116 = vld [vmem:[%s101 + $0x70] sm:$0xff]
    %v117 = vld [vmem:[%s101 + $0x78] sm:$0xff]
    %v118 = vperm.slane %v60, 1
    %119 = vmatpush.msra.mxu0 %v117
    %120 = vmatpush.msra.mxu0 %v116
    %121 = vmatpush.msra.mxu0 %v115
    %122 = vmatpush.msra.mxu0 %v114
    %123 = vmatpush.msra.mxu0 %v113
    %124 = vmatpush.msra.mxu0 %v112
    %125 = vmatpush.msra.mxu0 %v111
    %126 = vmatpush.msra.mxu0 %v110
    %127 = vmatpush.msra.mxu0 %v109
    %128 = vmatpush.msra.mxu0 %v108
    %129 = vmatpush.msra.mxu0 %v107
    %130 = vmatpush.msra.mxu0 %v106
    %131 = vmatpush.msra.mxu0 %v105
    %132 = vmatpush.msra.mxu0 %v104
    %133 = vmatpush.msra.mxu0 %v103
    %134 = vmatpush.msra.mxu0 %v102
    %135 = vmatmul.f32.gmra.mxu0 %v100
    %v136 = vpop.f32.mrf.mxu0
    %v137 = vadd.f32 %v118, %v136
    %138 = vdwg.mxu0
    %v139 = vmax.f32 %v137, 0.0
    %s140 = scalar_lea.vmem [#allocation5], 256
    %v141 = vld [vmem:[%s140] sm:$0xff]
    %v142 = vld [vmem:[%s140 + $0x8] sm:$0xff]
    %v143 = vld [vmem:[%s140 + $0x10] sm:$0xff]
    %v144 = vld [vmem:[%s140 + $0x18] sm:$0xff]
    %v145 = vld [vmem:[%s140 + $0x20] sm:$0xff]
    %v146 = vld [vmem:[%s140 + $0x28] sm:$0xff]
    %v147 = vld [vmem:[%s140 + $0x30] sm:$0xff]
    %v148 = vld [vmem:[%s140 + $0x38] sm:$0xff]
    %v149 = vld [vmem:[%s140 + $0x40] sm:$0xff]
    %v150 = vld [vmem:[%s140 + $0x48] sm:$0xff]
    %v151 = vld [vmem:[%s140 + $0x50] sm:$0xff]
    %v152 = vld [vmem:[%s140 + $0x58] sm:$0xff]
    %v153 = vld [vmem:[%s140 + $0x60] sm:$0xff]
    %v154 = vld [vmem:[%s140 + $0x68] sm:$0xff]
    %v155 = vld [vmem:[%s140 + $0x70] sm:$0xff]
    %v156 = vld [vmem:[%s140 + $0x78] sm:$0xff]
    %v157 = vperm.slane %v60, 2
    %158 = vmatpush.msra.mxu0 %v156
    %159 = vmatpush.msra.mxu0 %v155
    %160 = vmatpush.msra.mxu0 %v154
    %161 = vmatpush.msra.mxu0 %v153
    %162 = vmatpush.msra.mxu0 %v152
    %163 = vmatpush.msra.mxu0 %v151
    %164 = vmatpush.msra.mxu0 %v150
    %165 = vmatpush.msra.mxu0 %v149
    %166 = vmatpush.msra.mxu0 %v148
    %167 = vmatpush.msra.mxu0 %v147
    %168 = vmatpush.msra.mxu0 %v146
    %169 = vmatpush.msra.mxu0 %v145
    %170 = vmatpush.msra.mxu0 %v144
    %171 = vmatpush.msra.mxu0 %v143
    %172 = vmatpush.msra.mxu0 %v142
    %173 = vmatpush.msra.mxu0 %v141
    %174 = vmatmul.f32.gmra.mxu0 %v139
    %v175 = vpop.f32.mrf.mxu0
    %v176 = vadd.f32 %v157, %v175
    %177 = vdwg.mxu0
    %v178 = vmax.f32 %v176, 0.0
    %s179 = scalar_lea.vmem [#allocation5], 384
    %v180 = vld [vmem:[%s179] sm:$0xff]
    %v181 = vld [vmem:[%s179 + $0x8] sm:$0xff]
    %v182 = vld [vmem:[%s179 + $0x10] sm:$0xff]
    %v183 = vld [vmem:[%s179 + $0x18] sm:$0xff]
    %v184 = vld [vmem:[%s179 + $0x20] sm:$0xff]
    %v185 = vld [vmem:[%s179 + $0x28] sm:$0xff]
    %v186 = vld [vmem:[%s179 + $0x30] sm:$0xff]
    %v187 = vld [vmem:[%s179 + $0x38] sm:$0xff]
    %v188 = vld [vmem:[%s179 + $0x40] sm:$0xff]
    %v189 = vld [vmem:[%s179 + $0x48] sm:$0xff]
    %v190 = vld [vmem:[%s179 + $0x50] sm:$0xff]
    %v191 = vld [vmem:[%s179 + $0x58] sm:$0xff]
    %v192 = vld [vmem:[%s179 + $0x60] sm:$0xff]
    %v193 = vld [vmem:[%s179 + $0x68] sm:$0xff]
    %v194 = vld [vmem:[%s179 + $0x70] sm:$0xff]
    %v195 = vld [vmem:[%s179 + $0x78] sm:$0xff]
    %v196 = vperm.slane %v60, 3
    %197 = vmatpush.msra.mxu0 %v195
    %198 = vmatpush.msra.mxu0 %v194
    %199 = vmatpush.msra.mxu0 %v193
    %200 = vmatpush.msra.mxu0 %v192
    %201 = vmatpush.msra.mxu0 %v191
    %202 = vmatpush.msra.mxu0 %v190
    %203 = vmatpush.msra.mxu0 %v189
    %204 = vmatpush.msra.mxu0 %v188
    %205 = vmatpush.msra.mxu0 %v187
    %206 = vmatpush.msra.mxu0 %v186
    %207 = vmatpush.msra.mxu0 %v185
    %208 = vmatpush.msra.mxu0 %v184
    %209 = vmatpush.msra.mxu0 %v183
    %210 = vmatpush.msra.mxu0 %v182
    %211 = vmatpush.msra.mxu0 %v181
    %212 = vmatpush.msra.mxu0 %v180
    %213 = vmatmul.f32.gmra.mxu0 %v178
    %v214 = vpop.f32.mrf.mxu0
    %v215 = vadd.f32 %v196, %v214
    %216 = vdwg.mxu0
    %v217 = vmax.f32 %v215, 0.0
    %s218 = scalar_lea.vmem [#allocation5], 512
    %v219 = vld [vmem:[%s218] sm:$0xff]
    %v220 = vld [vmem:[%s218 + $0x8] sm:$0xff]
    %v221 = vld [vmem:[%s218 + $0x10] sm:$0xff]
    %v222 = vld [vmem:[%s218 + $0x18] sm:$0xff]
    %v223 = vld [vmem:[%s218 + $0x20] sm:$0xff]
    %v224 = vld [vmem:[%s218 + $0x28] sm:$0xff]
    %v225 = vld [vmem:[%s218 + $0x30] sm:$0xff]
    %v226 = vld [vmem:[%s218 + $0x38] sm:$0xff]
    %v227 = vld [vmem:[%s218 + $0x40] sm:$0xff]
    %v228 = vld [vmem:[%s218 + $0x48] sm:$0xff]
    %v229 = vld [vmem:[%s218 + $0x50] sm:$0xff]
    %v230 = vld [vmem:[%s218 + $0x58] sm:$0xff]
    %v231 = vld [vmem:[%s218 + $0x60] sm:$0xff]
    %v232 = vld [vmem:[%s218 + $0x68] sm:$0xff]
    %v233 = vld [vmem:[%s218 + $0x70] sm:$0xff]
    %v234 = vld [vmem:[%s218 + $0x78] sm:$0xff]
    %v235 = vperm.slane %v60, 4
    %236 = vmatpush.msra.mxu0 %v234
    %237 = vmatpush.msra.mxu0 %v233
    %238 = vmatpush.msra.mxu0 %v232
    %239 = vmatpush.msra.mxu0 %v231
    %240 = vmatpush.msra.mxu0 %v230
    %241 = vmatpush.msra.mxu0 %v229
    %242 = vmatpush.msra.mxu0 %v228
    %243 = vmatpush.msra.mxu0 %v227
    %244 = vmatpush.msra.mxu0 %v226
    %245 = vmatpush.msra.mxu0 %v225
    %246 = vmatpush.msra.mxu0 %v224
    %247 = vmatpush.msra.mxu0 %v223
    %248 = vmatpush.msra.mxu0 %v222
    %249 = vmatpush.msra.mxu0 %v221
    %250 = vmatpush.msra.mxu0 %v220
    %251 = vmatpush.msra.mxu0 %v219
    %252 = vmatmul.f32.gmra.mxu0 %v217
    %v253 = vpop.f32.mrf.mxu0
    %v254 = vadd.f32 %v235, %v253
    %255 = vdwg.mxu0
    %v256 = vmax.f32 %v254, 0.0
    %s257 = scalar_lea.vmem [#allocation5], 640
    %v258 = vld [vmem:[%s257] sm:$0xff]
    %v259 = vld [vmem:[%s257 + $0x8] sm:$0xff]
    %v260 = vld [vmem:[%s257 + $0x10] sm:$0xff]
    %v261 = vld [vmem:[%s257 + $0x18] sm:$0xff]
    %v262 = vld [vmem:[%s257 + $0x20] sm:$0xff]
    %v263 = vld [vmem:[%s257 + $0x28] sm:$0xff]
    %v264 = vld [vmem:[%s257 + $0x30] sm:$0xff]
    %v265 = vld [vmem:[%s257 + $0x38] sm:$0xff]
    %v266 = vld [vmem:[%s257 + $0x40] sm:$0xff]
    %v267 = vld [vmem:[%s257 + $0x48] sm:$0xff]
    %v268 = vld [vmem:[%s257 + $0x50] sm:$0xff]
    %v269 = vld [vmem:[%s257 + $0x58] sm:$0xff]
    %v270 = vld [vmem:[%s257 + $0x60] sm:$0xff]
    %v271 = vld [vmem:[%s257 + $0x68] sm:$0xff]
    %v272 = vld [vmem:[%s257 + $0x70] sm:$0xff]
    %v273 = vld [vmem:[%s257 + $0x78] sm:$0xff]
    %v274 = vperm.slane %v60, 5
    %275 = vmatpush.msra.mxu0 %v273
    %276 = vmatpush.msra.mxu0 %v272
    %277 = vmatpush.msra.mxu0 %v271
    %278 = vmatpush.msra.mxu0 %v270
    %279 = vmatpush.msra.mxu0 %v269
    %280 = vmatpush.msra.mxu0 %v268
    %281 = vmatpush.msra.mxu0 %v267
    %282 = vmatpush.msra.mxu0 %v266
    %283 = vmatpush.msra.mxu0 %v265
    %284 = vmatpush.msra.mxu0 %v264
    %285 = vmatpush.msra.mxu0 %v263
    %286 = vmatpush.msra.mxu0 %v262
    %287 = vmatpush.msra.mxu0 %v261
    %288 = vmatpush.msra.mxu0 %v260
    %289 = vmatpush.msra.mxu0 %v259
    %290 = vmatpush.msra.mxu0 %v258
    %291 = vmatmul.f32.gmra.mxu0 %v256
    %v292 = vpop.f32.mrf.mxu0
    %v293 = vadd.f32 %v274, %v292
    %294 = vdwg.mxu0
    %v295 = vmax.f32 %v293, 0.0
    %s296 = scalar_lea.vmem [#allocation5], 768
    %v297 = vld [vmem:[%s296] sm:$0xff]
    %v298 = vld [vmem:[%s296 + $0x8] sm:$0xff]
    %v299 = vld [vmem:[%s296 + $0x10] sm:$0xff]
    %v300 = vld [vmem:[%s296 + $0x18] sm:$0xff]
    %v301 = vld [vmem:[%s296 + $0x20] sm:$0xff]
    %v302 = vld [vmem:[%s296 + $0x28] sm:$0xff]
    %v303 = vld [vmem:[%s296 + $0x30] sm:$0xff]
    %v304 = vld [vmem:[%s296 + $0x38] sm:$0xff]
    %v305 = vld [vmem:[%s296 + $0x40] sm:$0xff]
    %v306 = vld [vmem:[%s296 + $0x48] sm:$0xff]
    %v307 = vld [vmem:[%s296 + $0x50] sm:$0xff]
    %v308 = vld [vmem:[%s296 + $0x58] sm:$0xff]
    %v309 = vld [vmem:[%s296 + $0x60] sm:$0xff]
    %v310 = vld [vmem:[%s296 + $0x68] sm:$0xff]
    %v311 = vld [vmem:[%s296 + $0x70] sm:$0xff]
    %v312 = vld [vmem:[%s296 + $0x78] sm:$0xff]
    %v313 = vperm.slane %v60, 6
    %314 = vmatpush.msra.mxu0 %v312
    %315 = vmatpush.msra.mxu0 %v311
    %316 = vmatpush.msra.mxu0 %v310
    %317 = vmatpush.msra.mxu0 %v309
    %318 = vmatpush.msra.mxu0 %v308
    %319 = vmatpush.msra.mxu0 %v307
    %320 = vmatpush.msra.mxu0 %v306
    %321 = vmatpush.msra.mxu0 %v305
    %322 = vmatpush.msra.mxu0 %v304
    %323 = vmatpush.msra.mxu0 %v303
    %324 = vmatpush.msra.mxu0 %v302
    %325 = vmatpush.msra.mxu0 %v301
    %326 = vmatpush.msra.mxu0 %v300
    %327 = vmatpush.msra.mxu0 %v299
    %328 = vmatpush.msra.mxu0 %v298
    %329 = vmatpush.msra.mxu0 %v297
    %330 = vmatmul.f32.gmra.mxu0 %v295
    %v331 = vpop.f32.mrf.mxu0
    %v332 = vadd.f32 %v313, %v331
    %333 = vdwg.mxu0
    %v334 = vmax.f32 %v332, 0.0
    %s335 = scalar_lea.vmem [#allocation5], 896
    %v336 = vld [vmem:[%s335] sm:$0xff]
    %v337 = vld [vmem:[%s335 + $0x8] sm:$0xff]
    %v338 = vld [vmem:[%s335 + $0x10] sm:$0xff]
    %v339 = vld [vmem:[%s335 + $0x18] sm:$0xff]
    %v340 = vld [vmem:[%s335 + $0x20] sm:$0xff]
    %v341 = vld [vmem:[%s335 + $0x28] sm:$0xff]
    %v342 = vld [vmem:[%s335 + $0x30] sm:$0xff]
    %v343 = vld [vmem:[%s335 + $0x38] sm:$0xff]
    %v344 = vld [vmem:[%s335 + $0x40] sm:$0xff]
    %v345 = vld [vmem:[%s335 + $0x48] sm:$0xff]
    %v346 = vld [vmem:[%s335 + $0x50] sm:$0xff]
    %v347 = vld [vmem:[%s335 + $0x58] sm:$0xff]
    %v348 = vld [vmem:[%s335 + $0x60] sm:$0xff]
    %v349 = vld [vmem:[%s335 + $0x68] sm:$0xff]
    %v350 = vld [vmem:[%s335 + $0x70] sm:$0xff]
    %v351 = vld [vmem:[%s335 + $0x78] sm:$0xff]
    %v352 = vperm.slane %v60, 7
    %353 = vmatpush.msra.mxu0 %v351
    %354 = vmatpush.msra.mxu0 %v350
    %355 = vmatpush.msra.mxu0 %v349
    %356 = vmatpush.msra.mxu0 %v348
    %357 = vmatpush.msra.mxu0 %v347
    %358 = vmatpush.msra.mxu0 %v346
    %359 = vmatpush.msra.mxu0 %v345
    %360 = vmatpush.msra.mxu0 %v344
    %361 = vmatpush.msra.mxu0 %v343
    %362 = vmatpush.msra.mxu0 %v342
    %363 = vmatpush.msra.mxu0 %v341
    %364 = vmatpush.msra.mxu0 %v340
    %365 = vmatpush.msra.mxu0 %v339
    %366 = vmatpush.msra.mxu0 %v338
    %367 = vmatpush.msra.mxu0 %v337
    %368 = vmatpush.msra.mxu0 %v336
    %369 = vmatmul.f32.gmra.mxu0 %v334
    %v370 = vpop.f32.mrf.mxu0
    %v371 = vadd.f32 %v352, %v370
    %372 = vdwg.mxu0
    %v373 = vmax.f32 %v371, 0.0
    %s374 = scalar_lea.vmem [#allocation5], 1024
    %v375 = vld [vmem:[%s374] sm:$0xff]
    %v376 = vld [vmem:[%s374 + $0x8] sm:$0xff]
    %v377 = vld [vmem:[%s374 + $0x10] sm:$0xff]
    %v378 = vld [vmem:[%s374 + $0x18] sm:$0xff]
    %v379 = vld [vmem:[%s374 + $0x20] sm:$0xff]
    %v380 = vld [vmem:[%s374 + $0x28] sm:$0xff]
    %v381 = vld [vmem:[%s374 + $0x30] sm:$0xff]
    %v382 = vld [vmem:[%s374 + $0x38] sm:$0xff]
    %v383 = vld [vmem:[%s374 + $0x40] sm:$0xff]
    %v384 = vld [vmem:[%s374 + $0x48] sm:$0xff]
    %v385 = vld [vmem:[%s374 + $0x50] sm:$0xff]
    %v386 = vld [vmem:[%s374 + $0x58] sm:$0xff]
    %v387 = vld [vmem:[%s374 + $0x60] sm:$0xff]
    %v388 = vld [vmem:[%s374 + $0x68] sm:$0xff]
    %v389 = vld [vmem:[%s374 + $0x70] sm:$0xff]
    %v390 = vld [vmem:[%s374 + $0x78] sm:$0xff]
    %v391 = vperm.slane %v61, 0
    %392 = vmatpush.msra.mxu0 %v390
    %393 = vmatpush.msra.mxu0 %v389
    %394 = vmatpush.msra.mxu0 %v388
    %395 = vmatpush.msra.mxu0 %v387
    %396 = vmatpush.msra.mxu0 %v386
    %397 = vmatpush.msra.mxu0 %v385
    %398 = vmatpush.msra.mxu0 %v384
    %399 = vmatpush.msra.mxu0 %v383
    %400 = vmatpush.msra.mxu0 %v382
    %401 = vmatpush.msra.mxu0 %v381
    %402 = vmatpush.msra.mxu0 %v380
    %403 = vmatpush.msra.mxu0 %v379
    %404 = vmatpush.msra.mxu0 %v378
    %405 = vmatpush.msra.mxu0 %v377
    %406 = vmatpush.msra.mxu0 %v376
    %407 = vmatpush.msra.mxu0 %v375
    %408 = vmatmul.f32.gmra.mxu0 %v373
    %v409 = vpop.f32.mrf.mxu0
    %v410 = vadd.f32 %v391, %v409
    %411 = vdwg.mxu0
    %v412 = vmax.f32 %v410, 0.0
    %s413 = scalar_lea.vmem [#allocation5], 1152
    %v414 = vld [vmem:[%s413] sm:$0xff]
    %v415 = vld [vmem:[%s413 + $0x8] sm:$0xff]
    %v416 = vld [vmem:[%s413 + $0x10] sm:$0xff]
    %v417 = vld [vmem:[%s413 + $0x18] sm:$0xff]
    %v418 = vld [vmem:[%s413 + $0x20] sm:$0xff]
    %v419 = vld [vmem:[%s413 + $0x28] sm:$0xff]
    %v420 = vld [vmem:[%s413 + $0x30] sm:$0xff]
    %v421 = vld [vmem:[%s413 + $0x38] sm:$0xff]
    %v422 = vld [vmem:[%s413 + $0x40] sm:$0xff]
    %v423 = vld [vmem:[%s413 + $0x48] sm:$0xff]
    %v424 = vld [vmem:[%s413 + $0x50] sm:$0xff]
    %v425 = vld [vmem:[%s413 + $0x58] sm:$0xff]
    %v426 = vld [vmem:[%s413 + $0x60] sm:$0xff]
    %v427 = vld [vmem:[%s413 + $0x68] sm:$0xff]
    %v428 = vld [vmem:[%s413 + $0x70] sm:$0xff]
    %v429 = vld [vmem:[%s413 + $0x78] sm:$0xff]
    %v430 = vperm.slane %v61, 1
    %431 = vmatpush.msra.mxu0 %v429
    %432 = vmatpush.msra.mxu0 %v428
    %433 = vmatpush.msra.mxu0 %v427
    %434 = vmatpush.msra.mxu0 %v426
    %435 = vmatpush.msra.mxu0 %v425
    %436 = vmatpush.msra.mxu0 %v424
    %437 = vmatpush.msra.mxu0 %v423
    %438 = vmatpush.msra.mxu0 %v422
    %439 = vmatpush.msra.mxu0 %v421
    %440 = vmatpush.msra.mxu0 %v420
    %441 = vmatpush.msra.mxu0 %v419
    %442 = vmatpush.msra.mxu0 %v418
    %443 = vmatpush.msra.mxu0 %v417
    %444 = vmatpush.msra.mxu0 %v416
    %445 = vmatpush.msra.mxu0 %v415
    %446 = vmatpush.msra.mxu0 %v414
    %447 = vmatmul.f32.gmra.mxu0 %v412
    %v448 = vpop.f32.mrf.mxu0
    %v449 = vadd.f32 %v430, %v448
    %450 = vdwg.mxu0
    %v451 = vmax.f32 %v449, 0.0
    %452 = vst [vmem:[#allocation8] sm:$0x3] %v451
    // Predicated region
    $region26: #{tpu_custom_call.1} parent=1 // pred_check
      _
    $region27: #{tpu_custom_call.1} parent=1 // pred_check_branch
      %454 = sbr.rel (0) target = $region29
    $region28: #{tpu_custom_call.1} parent=1 // pred_region
      %456 = vsyncadd [#allocation4], 0
      %s458 = sshll.u32 [#allocation8], 4
      %s459 = int_to_ptr.vmem [resolvable:$true] %s458
      %s460 = sshll.u32 %s3, 4
      %s461 = int_to_ptr.hbm [resolvable:$true] %s460
      %463 = dma.vmem_to_hbm [thread:$0]  %s459, 32, %s461, [#allocation4]
    $region29: #{tpu_custom_call.1} parent=1 // pred_fallthru
      _
    // Predicated region
    $region30: #{tpu_custom_call.1} parent=1 // pred_check
      _
    $region31: #{tpu_custom_call.1} parent=1 // pred_check_branch
      %465 = sbr.rel (0) target = $region33
    $region32: #{tpu_custom_call.1} parent=1 // pred_region
      %467 = dma.done [#allocation4], 32
    $region33: #{tpu_custom_call.1} parent=1 // pred_fallthru
      _
    %468 = vsyncpa [#allocation3], 1
    %469 = vsyncpa [#allocation6], 1
    %470 = vsyncpa [#allocation4], 1

</llo_original>
